<compile_context>
chip_gen: v5e
topology: v5e:2x2
jax: 0.10.0
libtpu: 0.0.40
codegen_flags: <defaults>
</compile_context>

<pallas_src>
import functools
import math

import jax
import jax.numpy as jnp
from jax.experimental import pallas as pl
from jax.experimental.pallas import tpu as pltpu

_LANES = 128
_MAX_ROW_TILE = 2048   # (2048,128) f32 block = 1 MiB; 2 inputs x 2 bufs = 4 MiB
_STRIP = 64            # rows per in-kernel accumulation strip (8 f32 vregs)


def _num_tensorcores():
    """2 on megacore chips (v4/v5p/v7x) where 'parallel' splits the grid; else 1."""
    try:
        kind = jax.devices()[0].device_kind.lower()
    except Exception:
        return 1
    if "lite" in kind or "v5e" in kind or "v6" in kind:
        return 1
    if "v4" in kind or "v5p" in kind or "7x" in kind or "v7" in kind:
        return 2
    return 1


def _depth_loss_kernel(p_ref, l_ref, num_ref, den_ref, *,
                       rows, row_tile, strip):
    """Accumulate sum(|p-l|*mask) and sum(mask) into (8,128) lane-dense partials."""
    i = pl.program_id(1)

    @pl.when(i == 0)
    def _():
        num_ref[...] = jnp.zeros_like(num_ref)
        den_ref[...] = jnp.zeros_like(den_ref)

    n_strips = row_tile // strip
    folds = strip // 8

    # Unclamped global tile index: detects (a) the partial last tile and
    # (b) the clamped duplicate tile a second core may see when tiles_total
    # is odd (its rows all fall out of bounds -> contributes 0).
    global_tile = pl.program_id(0) * pl.num_programs(1) + i
    base_row = global_tile * row_tile
    is_full = base_row + row_tile <= rows

    def accumulate(masked):
        def body(j, carry):
            acc_n, acc_d = carry
            r0 = pl.multiple_of(j * strip, strip)
            p = p_ref[pl.ds(r0, strip), :].astype(jnp.float32)
            l = l_ref[pl.ds(r0, strip), :].astype(jnp.float32)
            valid = l > 1e-6
            if masked:
                row_ids = (base_row + r0
                           + jax.lax.broadcasted_iota(jnp.int32, p.shape, 0))
                valid = jnp.logical_and(valid, row_ids < rows)
                # Keep select semantics: overhanging rows hold undefined data,
                # so abs(p - l) there must be discarded, not multiplied.
                l1 = jnp.where(valid, jnp.abs(p - l), 0.0)
                msk = jnp.where(valid, 1.0, 0.0)
            else:
                # Fast path: all rows are real data -> cheaper mask-multiply.
                msk = valid.astype(jnp.float32)
                l1 = jnp.abs(p - l) * msk
            # Fold (strip,128) -> (8,128) with pure vreg adds (no XLU).
            acc_n = acc_n + l1.reshape(folds, 8, _LANES).sum(axis=0)
            acc_d = acc_d + msk.reshape(folds, 8, _LANES).sum(axis=0)
            return acc_n, acc_d

        zeros = jnp.zeros((8, _LANES), jnp.float32)
        acc_n, acc_d = jax.lax.fori_loop(0, n_strips, body, (zeros, zeros))
        num_ref[...] += acc_n
        den_ref[...] += acc_d

    @pl.when(is_full)
    def _():
        accumulate(masked=False)

    @pl.when(jnp.logical_not(is_full))
    def _():
        accumulate(masked=True)


def depth_loss(depth_preds, depth_labels, loss_weights):
    """Pallas implementation of DepthLoss.forward (ssim=None)."""
    assert depth_preds.shape == depth_labels.shape
    w_l1 = float(loss_weights['l1_loss'])
    # ssim is None in this configuration, so the ssim_loss term is exactly 0
    # and w_ssim never enters the result.

    total = math.prod(depth_preds.shape)

    p = depth_preds.reshape(-1)
    l = depth_labels.reshape(-1)

    # Reshape (free) to (rows, 128) in the native dtype; padding only when
    # numel is not already a multiple of 128 (and up to at least 8 rows).
    target = max(8 * _LANES, pl.cdiv(total, _LANES) * _LANES)
    pad = target - total
    if pad:
        # TODO(synk): this pad materializes a copy of both inputs; avoiding it
        # would need a 1-D block layout + lane mask, which lowers poorly on
        # TPU (1-D VMEM arrays are sublane-sparse). Zero labels contribute 0.
        p = jnp.pad(p, (0, pad))
        l = jnp.pad(l, (0, pad))

    rows = target // _LANES
    p2d = p.reshape(rows, _LANES)   # native dtype; cast happens in-kernel
    l2d = l.reshape(rows, _LANES)

    # Row tile: multiple of 64 (native bf16/int8 packing, evenly divided by
    # the 64-row strip loop), capped so double-buffered inputs stay ~4 MiB.
    if rows >= 64:
        row_tile = min(_MAX_ROW_TILE, (rows // 64) * 64)
    else:
        row_tile = max(8, (rows // 8) * 8)
    strip = min(_STRIP, row_tile)

    tiles_total = pl.cdiv(rows, row_tile)
    num_cores = min(_num_tensorcores(), tiles_total)
    tiles_per_core = pl.cdiv(tiles_total, num_cores)

    def in_map(c, i):
        # Clamp so the block start always lies inside the array; redundant
        # (clamped) tiles are zeroed by the in-kernel bounds mask.
        return (jnp.minimum(c * tiles_per_core + i, tiles_total - 1), 0)

    kernel = functools.partial(_depth_loss_kernel, rows=rows,
                               row_tile=row_tile, strip=strip)

    in_bytes = total * (p2d.dtype.itemsize + l2d.dtype.itemsize)
    cost = pl.CostEstimate(
        flops=6 * total,
        transcendentals=0,
        bytes_accessed=in_bytes + 2 * num_cores * 8 * _LANES * 4,
    )

    num_parts, den_parts = pl.pallas_call(
        kernel,
        out_shape=(
            jax.ShapeDtypeStruct((num_cores, 8, _LANES), jnp.float32),
            jax.ShapeDtypeStruct((num_cores, 8, _LANES), jnp.float32),
        ),
        grid_spec=pltpu.PrefetchScalarGridSpec(
            num_scalar_prefetch=0,
            grid=(num_cores, tiles_per_core),
            in_specs=[
                pl.BlockSpec((row_tile, _LANES), in_map),
                pl.BlockSpec((row_tile, _LANES), in_map),
            ],
            out_specs=[
                pl.BlockSpec((None, 8, _LANES), lambda c, i: (c, 0, 0)),
                pl.BlockSpec((None, 8, _LANES), lambda c, i: (c, 0, 0)),
            ],
        ),
        compiler_params=pltpu.CompilerParams(
            dimension_semantics=("parallel", "arbitrary")),
        cost_estimate=cost,
    )(p2d, l2d)

    num = jnp.sum(num_parts)
    den = jnp.sum(den_parts)
    combined_loss = (w_l1 * num) / (den + 1e-6)
    return {'losses': {'depth_loss': combined_loss}}


def _reference(depth_preds, depth_labels, loss_weights):
    valid_mask = (depth_labels > 1e-6).astype(jnp.float32)
    l1 = jnp.abs(depth_preds * valid_mask - depth_labels * valid_mask)
    combined = loss_weights['l1_loss'] * l1 + loss_weights['ssim_loss'] * 0.0
    return jnp.sum(combined * valid_mask) / (jnp.sum(valid_mask) + 1e-6)


if __name__ == "__main__":
    key = jax.random.PRNGKey(0)
    k1, k2 = jax.random.split(key)

    # NCHW depth maps: batch=2, channels=1, spatial=64x64
    shape = (2, 1, 64, 64)
    depth_preds = jax.random.uniform(k1, shape, jnp.float32, 0.0, 10.0)
    # Labels: mostly positive depths, ~30% zeros (invalid pixels -> mask 0)
    raw_labels = jax.random.uniform(k2, shape, jnp.float32, 0.0, 10.0)
    invalid = jax.random.bernoulli(jax.random.PRNGKey(42), 0.3, shape)
    depth_labels = jnp.where(invalid, 0.0, raw_labels)

    loss_weights = {'l1_loss': 1.0, 'ssim_loss': 0.85}

    out = depth_loss(depth_preds, depth_labels, loss_weights)
    loss_val = jax.block_until_ready(out['losses']['depth_loss'])

    ref = jax.block_until_ready(_reference(depth_preds, depth_labels,
                                           loss_weights))
    assert jnp.allclose(loss_val, ref, rtol=1e-5, atol=1e-6), (loss_val, ref)

    print("KERNEL_OK")
</pallas_src>

<mosaic_0001>
module attributes {stable_mosaic.version = 11 : i64} {
  func.func @_depth_loss_kernel(%arg0: i32, %arg1: i32, %arg2: memref<64x128xf32, #tpu.memory_space<vmem>>, %arg3: memref<64x128xf32, #tpu.memory_space<vmem>>, %arg4: memref<1x8x128xf32, #tpu.memory_space<vmem>>, %arg5: memref<1x8x128xf32, #tpu.memory_space<vmem>>) attributes {dimension_semantics = [#tpu.dimension_semantics<parallel>, #tpu.dimension_semantics<arbitrary>], iteration_bounds = array<i64: 1, 1>, scalar_prefetch = 0 : i64, scratch_operands = 0 : i64, tpu.core_type = #tpu.core_type<tc>, window_params = [{transform_indices = @transform_0, window_bounds = array<i64: 64, 128>}, {transform_indices = @transform_1, window_bounds = array<i64: 64, 128>}, {transform_indices = @transform_2, window_bounds = array<i64: 1, 8, 128>}, {transform_indices = @transform_3, window_bounds = array<i64: 1, 8, 128>}]} {
    %c0_i32 = arith.constant 0 : i32
    %0 = arith.cmpi eq, %arg1, %c0_i32 : i32
    %1 = arith.extui %0 : i1 to i32
    %c0_i32_0 = arith.constant 0 : i32
    %2 = arith.cmpi ne, %1, %c0_i32_0 : i32
    scf.if %2 {
      %cst = arith.constant 0.000000e+00 : f32
      %13 = vector.broadcast %cst : f32 to vector<8x128xf32>
      %c0 = arith.constant 0 : index
      %c0_5 = arith.constant 0 : index
      %c0_6 = arith.constant 0 : index
      %14 = vector.load %arg4[%c0, %c0_5, %c0_6] : memref<1x8x128xf32, #tpu.memory_space<vmem>>, vector<1x8x128xf32>
      %15 = vector.shape_cast %14 : vector<1x8x128xf32> to vector<8x128xf32>
      %16 = vector.shape_cast %13 : vector<8x128xf32> to vector<1x8x128xf32>
      tpu.vector_store %arg4[%c0, %c0_5, %c0_6], %16 {strides = array<i32>} : memref<1x8x128xf32, #tpu.memory_space<vmem>>, vector<1x8x128xf32>,
      %cst_7 = arith.constant 0.000000e+00 : f32
      %17 = vector.broadcast %cst_7 : f32 to vector<8x128xf32>
      %c0_8 = arith.constant 0 : index
      %c0_9 = arith.constant 0 : index
      %c0_10 = arith.constant 0 : index
      %18 = vector.load %arg5[%c0_8, %c0_9, %c0_10] : memref<1x8x128xf32, #tpu.memory_space<vmem>>, vector<1x8x128xf32>
      %19 = vector.shape_cast %18 : vector<1x8x128xf32> to vector<8x128xf32>
      %20 = vector.shape_cast %17 : vector<8x128xf32> to vector<1x8x128xf32>
      tpu.vector_store %arg5[%c0_8, %c0_9, %c0_10], %20 {strides = array<i32>} : memref<1x8x128xf32, #tpu.memory_space<vmem>>, vector<1x8x128xf32>,
    } else {
    }
    %c1_i32 = arith.constant 1 : i32
    %3 = arith.muli %arg0, %c1_i32 : i32
    %4 = arith.addi %3, %arg1 : i32
    %c64_i32 = arith.constant 64 : i32
    %5 = arith.muli %4, %c64_i32 : i32
    %c64_i32_1 = arith.constant 64 : i32
    %6 = arith.addi %5, %c64_i32_1 : i32
    %c64_i32_2 = arith.constant 64 : i32
    %7 = arith.cmpi sle, %6, %c64_i32_2 : i32
    %8 = arith.extui %7 : i1 to i32
    %c0_i32_3 = arith.constant 0 : i32
    %9 = arith.cmpi ne, %8, %c0_i32_3 : i32
    scf.if %9 {
      %cst = arith.constant 0.000000e+00 : f32
      %13 = vector.broadcast %cst : f32 to vector<8x128xf32>
      %c0_i32_5 = arith.constant 0 : i32
      %c64_i32_6 = arith.constant 64 : i32
      %14 = arith.muli %c0_i32_5, %c64_i32_6 : i32
      %15 = tpu.assume_multiple %14, 64 : i32
      %16 = arith.index_cast %15 : i32 to index
      %c0 = arith.constant 0 : index
      %17 = vector.load %arg2[%16, %c0] : memref<64x128xf32, #tpu.memory_space<vmem>>, vector<64x128xf32>
      %18 = arith.index_cast %15 : i32 to index
      %c0_7 = arith.constant 0 : index
      %19 = vector.load %arg3[%18, %c0_7] : memref<64x128xf32, #tpu.memory_space<vmem>>, vector<64x128xf32>
      %cst_8 = arith.constant 9.99999997E-7 : f32
      %20 = vector.broadcast %cst_8 : f32 to vector<64x128xf32>
      %21 = arith.cmpf ogt, %19, %20 : vector<64x128xf32>
      %22 = arith.extui %21 : vector<64x128xi1> to vector<64x128xi32>
      %23 = arith.sitofp %22 : vector<64x128xi32> to vector<64x128xf32>
      %24 = arith.subf %17, %19 : vector<64x128xf32>
      %25 = math.absf %24 : vector<64x128xf32>
      %26 = arith.mulf %25, %23 : vector<64x128xf32>
      %27 = vector.shape_cast %26 : vector<64x128xf32> to vector<8x8x128xf32>
      %cst_9 = arith.constant dense<0.000000e+00> : vector<8x128xf32>
      %28 = vector.multi_reduction <add>, %27, %cst_9 [0] : vector<8x8x128xf32> to vector<8x128xf32>
      %29 = arith.addf %13, %28 : vector<8x128xf32>
      %30 = vector.shape_cast %23 : vector<64x128xf32> to vector<8x8x128xf32>
      %cst_10 = arith.constant dense<0.000000e+00> : vector<8x128xf32>
      %31 = vector.multi_reduction <add>, %30, %cst_10 [0] : vector<8x8x128xf32> to vector<8x128xf32>
      %32 = arith.addf %13, %31 : vector<8x128xf32>
      %c1_i32_11 = arith.constant 1 : i32
      %c0_12 = arith.constant 0 : index
      %c0_13 = arith.constant 0 : index
      %c0_14 = arith.constant 0 : index
      %33 = vector.load %arg4[%c0_12, %c0_13, %c0_14] : memref<1x8x128xf32, #tpu.memory_space<vmem>>, vector<1x8x128xf32>
      %34 = vector.shape_cast %33 : vector<1x8x128xf32> to vector<8x128xf32>
      %35 = arith.addf %34, %29 : vector<8x128xf32>
      %c0_15 = arith.constant 0 : index
      %c0_16 = arith.constant 0 : index
      %c0_17 = arith.constant 0 : index
      %36 = vector.load %arg4[%c0_15, %c0_16, %c0_17] : memref<1x8x128xf32, #tpu.memory_space<vmem>>, vector<1x8x128xf32>
      %37 = vector.shape_cast %36 : vector<1x8x128xf32> to vector<8x128xf32>
      %38 = vector.shape_cast %35 : vector<8x128xf32> to vector<1x8x128xf32>
      tpu.vector_store %arg4[%c0_15, %c0_16, %c0_17], %38 {strides = array<i32>} : memref<1x8x128xf32, #tpu.memory_space<vmem>>, vector<1x8x128xf32>,
      %c0_18 = arith.constant 0 : index
      %c0_19 = arith.constant 0 : index
      %c0_20 = arith.constant 0 : index
      %39 = vector.load %arg5[%c0_18, %c0_19, %c0_20] : memref<1x8x128xf32, #tpu.memory_space<vmem>>, vector<1x8x128xf32>
      %40 = vector.shape_cast %39 : vector<1x8x128xf32> to vector<8x128xf32>
      %41 = arith.addf %40, %32 : vector<8x128xf32>
      %c0_21 = arith.constant 0 : index
      %c0_22 = arith.constant 0 : index
      %c0_23 = arith.constant 0 : index
      %42 = vector.load %arg5[%c0_21, %c0_22, %c0_23] : memref<1x8x128xf32, #tpu.memory_space<vmem>>, vector<1x8x128xf32>
      %43 = vector.shape_cast %42 : vector<1x8x128xf32> to vector<8x128xf32>
      %44 = vector.shape_cast %41 : vector<8x128xf32> to vector<1x8x128xf32>
      tpu.vector_store %arg5[%c0_21, %c0_22, %c0_23], %44 {strides = array<i32>} : memref<1x8x128xf32, #tpu.memory_space<vmem>>, vector<1x8x128xf32>,
    } else {
    }
    %true = arith.constant true
    %10 = arith.xori %7, %true : i1
    %11 = arith.extui %10 : i1 to i32
    %c0_i32_4 = arith.constant 0 : i32
    %12 = arith.cmpi ne, %11, %c0_i32_4 : i32
    scf.if %12 {
      %cst = arith.constant 0.000000e+00 : f32
      %13 = vector.broadcast %cst : f32 to vector<8x128xf32>
      %c0_i32_5 = arith.constant 0 : i32
      %c64_i32_6 = arith.constant 64 : i32
      %14 = arith.muli %c0_i32_5, %c64_i32_6 : i32
      %15 = tpu.assume_multiple %14, 64 : i32
      %16 = arith.index_cast %15 : i32 to index
      %c0 = arith.constant 0 : index
      %17 = vector.load %arg2[%16, %c0] : memref<64x128xf32, #tpu.memory_space<vmem>>, vector<64x128xf32>
      %18 = arith.index_cast %15 : i32 to index
      %c0_7 = arith.constant 0 : index
      %19 = vector.load %arg3[%18, %c0_7] : memref<64x128xf32, #tpu.memory_space<vmem>>, vector<64x128xf32>
      %cst_8 = arith.constant 9.99999997E-7 : f32
      %20 = vector.broadcast %cst_8 : f32 to vector<64x128xf32>
      %21 = arith.cmpf ogt, %19, %20 : vector<64x128xf32>
      %22 = arith.addi %5, %15 : i32
      %23 = tpu.iota {dimensions = array<i32: 0>} : vector<64x128xi32>
      %24 = vector.broadcast %22 : i32 to vector<64x128xi32>
      %25 = arith.addi %24, %23 : vector<64x128xi32>
      %c64_i32_9 = arith.constant 64 : i32
      %26 = vector.broadcast %c64_i32_9 : i32 to vector<64x128xi32>
      %27 = arith.cmpi slt, %25, %26 : vector<64x128xi32>
      %28 = arith.andi %21, %27 : vector<64x128xi1>
      %29 = arith.subf %17, %19 : vector<64x128xf32>
      %30 = math.absf %29 : vector<64x128xf32>
      %cst_10 = arith.constant 0.000000e+00 : f32
      %31 = vector.broadcast %cst_10 : f32 to vector<64x128xf32>
      %32 = arith.select %28, %30, %31 : vector<64x128xi1>, vector<64x128xf32>
      %cst_11 = arith.constant 1.000000e+00 : f32
      %cst_12 = arith.constant 0.000000e+00 : f32
      %33 = vector.broadcast %cst_11 : f32 to vector<64x128xf32>
      %34 = vector.broadcast %cst_12 : f32 to vector<64x128xf32>
      %35 = arith.select %28, %33, %34 : vector<64x128xi1>, vector<64x128xf32>
      %36 = vector.shape_cast %32 : vector<64x128xf32> to vector<8x8x128xf32>
      %cst_13 = arith.constant dense<0.000000e+00> : vector<8x128xf32>
      %37 = vector.multi_reduction <add>, %36, %cst_13 [0] : vector<8x8x128xf32> to vector<8x128xf32>
      %38 = arith.addf %13, %37 : vector<8x128xf32>
      %39 = vector.shape_cast %35 : vector<64x128xf32> to vector<8x8x128xf32>
      %cst_14 = arith.constant dense<0.000000e+00> : vector<8x128xf32>
      %40 = vector.multi_reduction <add>, %39, %cst_14 [0] : vector<8x8x128xf32> to vector<8x128xf32>
      %41 = arith.addf %13, %40 : vector<8x128xf32>
      %c1_i32_15 = arith.constant 1 : i32
      %c0_16 = arith.constant 0 : index
      %c0_17 = arith.constant 0 : index
      %c0_18 = arith.constant 0 : index
      %42 = vector.load %arg4[%c0_16, %c0_17, %c0_18] : memref<1x8x128xf32, #tpu.memory_space<vmem>>, vector<1x8x128xf32>
      %43 = vector.shape_cast %42 : vector<1x8x128xf32> to vector<8x128xf32>
      %44 = arith.addf %43, %38 : vector<8x128xf32>
      %c0_19 = arith.constant 0 : index
      %c0_20 = arith.constant 0 : index
      %c0_21 = arith.constant 0 : index
      %45 = vector.load %arg4[%c0_19, %c0_20, %c0_21] : memref<1x8x128xf32, #tpu.memory_space<vmem>>, vector<1x8x128xf32>
      %46 = vector.shape_cast %45 : vector<1x8x128xf32> to vector<8x128xf32>
      %47 = vector.shape_cast %44 : vector<8x128xf32> to vector<1x8x128xf32>
      tpu.vector_store %arg4[%c0_19, %c0_20, %c0_21], %47 {strides = array<i32>} : memref<1x8x128xf32, #tpu.memory_space<vmem>>, vector<1x8x128xf32>,
      %c0_22 = arith.constant 0 : index
      %c0_23 = arith.constant 0 : index
      %c0_24 = arith.constant 0 : index
      %48 = vector.load %arg5[%c0_22, %c0_23, %c0_24] : memref<1x8x128xf32, #tpu.memory_space<vmem>>, vector<1x8x128xf32>
      %49 = vector.shape_cast %48 : vector<1x8x128xf32> to vector<8x128xf32>
      %50 = arith.addf %49, %41 : vector<8x128xf32>
      %c0_25 = arith.constant 0 : index
      %c0_26 = arith.constant 0 : index
      %c0_27 = arith.constant 0 : index
      %51 = vector.load %arg5[%c0_25, %c0_26, %c0_27] : memref<1x8x128xf32, #tpu.memory_space<vmem>>, vector<1x8x128xf32>
      %52 = vector.shape_cast %51 : vector<1x8x128xf32> to vector<8x128xf32>
      %53 = vector.shape_cast %50 : vector<8x128xf32> to vector<1x8x128xf32>
      tpu.vector_store %arg5[%c0_25, %c0_26, %c0_27], %53 {strides = array<i32>} : memref<1x8x128xf32, #tpu.memory_space<vmem>>, vector<1x8x128xf32>,
    } else {
    }
    return
  }
  func.func @transform_0(%arg0: i32, %arg1: i32) -> (i32, i32) {
    %c1_i32 = arith.constant 1 : i32
    %0 = arith.muli %arg0, %c1_i32 : i32
    %1 = arith.addi %0, %arg1 : i32
    %c0_i32 = arith.constant 0 : i32
    %2 = arith.minsi %1, %c0_i32 : i32
    %c0_i32_0 = arith.constant 0 : i32
    %c0_i32_1 = arith.constant 0 : i32
    return %2, %c0_i32_0 : i32, i32
  }
  func.func @transform_1(%arg0: i32, %arg1: i32) -> (i32, i32) {
    %c1_i32 = arith.constant 1 : i32
    %0 = arith.muli %arg0, %c1_i32 : i32
    %1 = arith.addi %0, %arg1 : i32
    %c0_i32 = arith.constant 0 : i32
    %2 = arith.minsi %1, %c0_i32 : i32
    %c0_i32_0 = arith.constant 0 : i32
    %c0_i32_1 = arith.constant 0 : i32
    return %2, %c0_i32_0 : i32, i32
  }
  func.func @transform_2(%arg0: i32, %arg1: i32) -> (i32, i32, i32) {
    %c0_i32 = arith.constant 0 : i32
    %c0_i32_0 = arith.constant 0 : i32
    %c0_i32_1 = arith.constant 0 : i32
    return %arg0, %c0_i32, %c0_i32_0 : i32, i32, i32
  }
  func.func @transform_3(%arg0: i32, %arg1: i32) -> (i32, i32, i32) {
    %c0_i32 = arith.constant 0 : i32
    %c0_i32_0 = arith.constant 0 : i32
    %c0_i32_1 = arith.constant 0 : i32
    return %arg0, %c0_i32, %c0_i32_0 : i32, i32, i32
  }
}

</mosaic_0001>

<llo_original>
// kernel: tpu_custom_call.1
$region0: #{tpu_custom_call.1}
  #allocation0 [shape = 'u32[]', space=smem, size = 0x4, offset = 0x4, fixed_abs, tag = 'smem constant byte address 0x4 - core index']
  #allocation1 [shape = 'u32[72,128]{1,0:T(1,128)}', space=vmem, size = 0x9000, scoped, tag = 'internal scratch']
  %s0 = inlined_call_operand.hbm [shape: f32[64,128], index: 0, kind: input, shape index: {}]
  %s1 = inlined_call_operand.hbm [shape: f32[64,128], index: 1, kind: input, shape index: {}]
  %s2 = inlined_call_operand.hbm [shape: f32[1,8,128], index: 2, kind: output, shape index: {0}]
  %s3 = inlined_call_operand.hbm [shape: f32[1,8,128], index: 3, kind: output, shape index: {1}]
  %4 = xla_tuple %s2, %s3
  %s5 = sld [smem:[#allocation0]]
  $region46: #{tpu_custom_call.1} parent=0
    _
  %s7 = ssub.s32 1, %s5
  %s8 = scalar_select 0, %s7, %s5
  $region1: #{tpu_custom_call.1} parent=0
    #allocation2 [shape = 'u8[32768]{0}', space=vmem, size = 0x8000, scoped, tag = 'input window, operand 0, single buffered']
    #allocation3 [shape = 's32[1]{0}', space=sflag, size = 0x4, scoped, tag = 'scoped memory for tpu_custom_call.1']
    #allocation4 [shape = 's32[1]{0}', space=sflag, size = 0x4, scoped, tag = 'scoped memory for tpu_custom_call.1']
    #allocation5 [shape = 'u8[32768]{0}', space=vmem, size = 0x8000, scoped, tag = 'input window, operand 1, single buffered']
    #allocation6 [shape = 's32[1]{0}', space=sflag, size = 0x4, scoped, tag = 'scoped memory for tpu_custom_call.1']
    #allocation7 [shape = 'u8[4096]{0}', space=vmem, size = 0x1000, scoped, tag = 'output window, operand 0, single buffered']
    #allocation8 [shape = 'u8[4096]{0}', space=vmem, size = 0x1000, scoped, tag = 'output window, operand 1, single buffered']
    #allocation9 [shape = 's32[1]{0}', space=sflag, size = 0x4, scoped, tag = 'scoped memory for tpu_custom_call.1']
    %9 = vsyncpa [#allocation3], 0
    %10 = vsyncpa [#allocation6], 0
    %11 = vsyncpa [#allocation4], 0
    %12 = vsyncpa [#allocation9], 0
    // Predicated region
    $region2: #{tpu_custom_call.1} parent=1 // pred_check
      _
    $region3: #{tpu_custom_call.1} parent=1 // pred_check_branch
      %14 = sbr.rel (0) target = $region5
    $region4: #{tpu_custom_call.1} parent=1 // pred_region
      %s15 = sadd.s32 0, 0
      %p16 = scmp.lt.s32.totalorder %s15, 0
      %s17 = scalar_select %p16, %s15, 0
      %s18 = smul.u32 8, %s17
      %20 = vsyncadd [#allocation3], 0
      %s21 = smul.addr %s18, 8
      %s22 = scalar_lea.hbm %s0, %s21
      %s23 = sshll.u32 %s22, 4
      %s24 = int_to_ptr.hbm [resolvable:$true] %s23
      %s25 = sshll.u32 [#allocation2], 4
      %s26 = int_to_ptr.vmem [resolvable:$true] %s25
      %31 = dma.hbm_to_vmem [thread:$0]  %s24, 1024, %s26, [#allocation3], 128, 128, 8
    $region5: #{tpu_custom_call.1} parent=1 // pred_fallthru
      _
    // Predicated region
    $region6: #{tpu_custom_call.1} parent=1 // pred_check
      _
    $region7: #{tpu_custom_call.1} parent=1 // pred_check_branch
      %33 = sbr.rel (0) target = $region9
    $region8: #{tpu_custom_call.1} parent=1 // pred_region
      %s34 = sadd.s32 0, 0
      %p35 = scmp.lt.s32.totalorder %s34, 0
      %s36 = scalar_select %p35, %s34, 0
      %s37 = smul.u32 8, %s36
      %39 = vsyncadd [#allocation6], 0
      %s40 = smul.addr %s37, 8
      %s41 = scalar_lea.hbm %s1, %s40
      %s42 = sshll.u32 %s41, 4
      %s43 = int_to_ptr.hbm [resolvable:$true] %s42
      %s44 = sshll.u32 [#allocation5], 4
      %s45 = int_to_ptr.vmem [resolvable:$true] %s44
      %50 = dma.hbm_to_vmem [thread:$0]  %s43, 1024, %s45, [#allocation6], 128, 128, 8
    $region9: #{tpu_custom_call.1} parent=1 // pred_fallthru
      _
    // Predicated region
    $region10: #{tpu_custom_call.1} parent=1 // pred_check
      _
    $region11: #{tpu_custom_call.1} parent=1 // pred_check_branch
      %52 = sbr.rel (0) target = $region13
    $region12: #{tpu_custom_call.1} parent=1 // pred_region
      %54 = dma.done [#allocation3], 1024
    $region13: #{tpu_custom_call.1} parent=1 // pred_fallthru
      _
    // Predicated region
    $region14: #{tpu_custom_call.1} parent=1 // pred_check
      _
    $region15: #{tpu_custom_call.1} parent=1 // pred_check_branch
      %56 = sbr.rel (0) target = $region17
    $region16: #{tpu_custom_call.1} parent=1 // pred_region
      %58 = dma.done [#allocation6], 1024
    $region17: #{tpu_custom_call.1} parent=1 // pred_fallthru
      _
    %s59 = sadd.s32 0, 0
    %p60 = scmp.lt.s32.totalorder %s59, 0
    %s61 = scalar_select %p60, %s59, 0
    %s62 = smul.u32 8, %s61
    %s63 = sadd.s32 0, 0
    %p64 = scmp.lt.s32.totalorder %s63, 0
    %s65 = scalar_select %p64, %s63, 0
    %s66 = smul.u32 8, %s65
    %p67 = scmp.eq.s32.totalorder 0, 0
    // Predicated region
    $region18: #{tpu_custom_call.1} parent=1 // pred_check
      %p68 = pneg %p67
    $region19: #{tpu_custom_call.1} parent=1 // pred_check_branch
      %70 = sbr.rel (%p68) target = $region21
    $region20: #{tpu_custom_call.1} parent=1 // pred_region
      %71 = vst [vmem:[#allocation7] sm:$0xff] 0.0
      %72 = vst [vmem:[#allocation8] sm:$0xff] 0.0
    $region21: #{tpu_custom_call.1} parent=1 // pred_fallthru
      _
    %s73 = sadd.s32 0, 0
    %s74 = smul.u32 %s73, 64
    %s75 = sadd.s32 %s74, 64
    %p76 = scmp.le.s32.totalorder %s75, 64
    // Predicated region
    $region22: #{tpu_custom_call.1} parent=1 // pred_check
      %p77 = pneg %p76
    $region23: #{tpu_custom_call.1} parent=1 // pred_check_branch
      %79 = sbr.rel (%p77) target = $region25
    $region24: #{tpu_custom_call.1} parent=1 // pred_region
      %v80 = vld [vmem:[#allocation2] sm:$0xff]
      %v81 = vld [vmem:[#allocation2 + $0x8] sm:$0xff]
      %v82 = vld [vmem:[#allocation2 + $0x10] sm:$0xff]
      %v83 = vld [vmem:[#allocation2 + $0x18] sm:$0xff]
      %v84 = vld [vmem:[#allocation2 + $0x20] sm:$0xff]
      %v85 = vld [vmem:[#allocation2 + $0x28] sm:$0xff]
      %v86 = vld [vmem:[#allocation2 + $0x30] sm:$0xff]
      %v87 = vld [vmem:[#allocation2 + $0x38] sm:$0xff]
      %v88 = vld [vmem:[#allocation5] sm:$0xff]
      %v89 = vld [vmem:[#allocation5 + $0x8] sm:$0xff]
      %v90 = vld [vmem:[#allocation5 + $0x10] sm:$0xff]
      %v91 = vld [vmem:[#allocation5 + $0x18] sm:$0xff]
      %v92 = vld [vmem:[#allocation5 + $0x20] sm:$0xff]
      %v93 = vld [vmem:[#allocation5 + $0x28] sm:$0xff]
      %v94 = vld [vmem:[#allocation5 + $0x30] sm:$0xff]
      %v95 = vld [vmem:[#allocation5 + $0x38] sm:$0xff]
      %vm96 = vcmp.gt.f32.partialorder %v88, 1e-06
      %vm97 = vcmp.gt.f32.partialorder %v89, 1e-06
      %vm98 = vcmp.gt.f32.partialorder %v90, 1e-06
      %vm99 = vcmp.gt.f32.partialorder %v91, 1e-06
      %vm100 = vcmp.gt.f32.partialorder %v92, 1e-06
      %vm101 = vcmp.gt.f32.partialorder %v93, 1e-06
      %vm102 = vcmp.gt.f32.partialorder %v94, 1e-06
      %vm103 = vcmp.gt.f32.partialorder %v95, 1e-06
      %v104 = vsel %vm96, 1, 0
      %v105 = vsel %vm97, 1, 0
      %v106 = vsel %vm98, 1, 0
      %v107 = vsel %vm99, 1, 0
      %v108 = vsel %vm100, 1, 0
      %v109 = vsel %vm101, 1, 0
      %v110 = vsel %vm102, 1, 0
      %v111 = vsel %vm103, 1, 0
      %v112 = vcvt.s32.f32 %v104
      %v113 = vcvt.s32.f32 %v105
      %v114 = vcvt.s32.f32 %v106
      %v115 = vcvt.s32.f32 %v107
      %v116 = vcvt.s32.f32 %v108
      %v117 = vcvt.s32.f32 %v109
      %v118 = vcvt.s32.f32 %v110
      %v119 = vcvt.s32.f32 %v111
      %v120 = vsub.f32 %v80, %v88
      %v121 = vsub.f32 %v81, %v89
      %v122 = vsub.f32 %v82, %v90
      %v123 = vsub.f32 %v83, %v91
      %v124 = vsub.f32 %v84, %v92
      %v125 = vsub.f32 %v85, %v93
      %v126 = vsub.f32 %v86, %v94
      %v127 = vsub.f32 %v87, %v95
      %v128 = vand.u32 2147483647, %v120
      %v129 = vand.u32 2147483647, %v121
      %v130 = vand.u32 2147483647, %v122
      %v131 = vand.u32 2147483647, %v123
      %v132 = vand.u32 2147483647, %v124
      %v133 = vand.u32 2147483647, %v125
      %v134 = vand.u32 2147483647, %v126
      %v135 = vand.u32 2147483647, %v127
      %v136 = vmul.f32 %v128, %v112
      %v137 = vmul.f32 %v129, %v113
      %v138 = vmul.f32 %v130, %v114
      %v139 = vmul.f32 %v131, %v115
      %v140 = vmul.f32 %v132, %v116
      %v141 = vmul.f32 %v133, %v117
      %v142 = vmul.f32 %v134, %v118
      %v143 = vmul.f32 %v135, %v119
      %v144 = vadd.f32 %v136, %v137
      %v145 = vadd.f32 %v144, %v138
      %v146 = vadd.f32 %v145, %v139
      %v147 = vadd.f32 %v146, %v140
      %v148 = vadd.f32 %v147, %v141
      %v149 = vadd.f32 %v148, %v142
      %v150 = vadd.f32 %v149, %v143
      %v151 = vadd.f32 %v150, 0.0
      %v152 = vadd.f32 %v112, %v113
      %v153 = vadd.f32 %v152, %v114
      %v154 = vadd.f32 %v153, %v115
      %v155 = vadd.f32 %v154, %v116
      %v156 = vadd.f32 %v155, %v117
      %v157 = vadd.f32 %v156, %v118
      %v158 = vadd.f32 %v157, %v119
      %v159 = vadd.f32 %v158, 0.0
      %v160 = vld [vmem:[#allocation7] sm:$0xff]
      %v161 = vadd.f32 %v160, %v151
      %162 = vst [vmem:[#allocation7] sm:$0xff] %v161
      %v163 = vld [vmem:[#allocation8] sm:$0xff]
      %v164 = vadd.f32 %v163, %v159
      %165 = vst [vmem:[#allocation8] sm:$0xff] %v164
    $region25: #{tpu_custom_call.1} parent=1 // pred_fallthru
      _
    %p166 = scmp.gt.s32.totalorder %s75, 64
    // Predicated region
    $region26: #{tpu_custom_call.1} parent=1 // pred_check
      %p167 = pneg %p166
    $region27: #{tpu_custom_call.1} parent=1 // pred_check_branch
      %169 = sbr.rel (%p167) target = $region29
    $region28: #{tpu_custom_call.1} parent=1 // pred_region
      %v170 = vld [vmem:[#allocation2] sm:$0xff]
      %v171 = vld [vmem:[#allocation2 + $0x8] sm:$0xff]
      %v172 = vld [vmem:[#allocation2 + $0x10] sm:$0xff]
      %v173 = vld [vmem:[#allocation2 + $0x18] sm:$0xff]
      %v174 = vld [vmem:[#allocation2 + $0x20] sm:$0xff]
      %v175 = vld [vmem:[#allocation2 + $0x28] sm:$0xff]
      %v176 = vld [vmem:[#allocation2 + $0x30] sm:$0xff]
      %v177 = vld [vmem:[#allocation2 + $0x38] sm:$0xff]
      %v178 = vld [vmem:[#allocation5] sm:$0xff]
      %v179 = vld [vmem:[#allocation5 + $0x8] sm:$0xff]
      %v180 = vld [vmem:[#allocation5 + $0x10] sm:$0xff]
      %v181 = vld [vmem:[#allocation5 + $0x18] sm:$0xff]
      %v182 = vld [vmem:[#allocation5 + $0x20] sm:$0xff]
      %v183 = vld [vmem:[#allocation5 + $0x28] sm:$0xff]
      %v184 = vld [vmem:[#allocation5 + $0x30] sm:$0xff]
      %v185 = vld [vmem:[#allocation5 + $0x38] sm:$0xff]
      %vm186 = vcmp.gt.f32.partialorder %v178, 1e-06
      %vm187 = vcmp.gt.f32.partialorder %v179, 1e-06
      %vm188 = vcmp.gt.f32.partialorder %v180, 1e-06
      %vm189 = vcmp.gt.f32.partialorder %v181, 1e-06
      %vm190 = vcmp.gt.f32.partialorder %v182, 1e-06
      %vm191 = vcmp.gt.f32.partialorder %v183, 1e-06
      %vm192 = vcmp.gt.f32.partialorder %v184, 1e-06
      %vm193 = vcmp.gt.f32.partialorder %v185, 1e-06
      %s194 = sadd.s32 %s74, 0
      %v195 = vlaneseq
      %v196 = vshrl.u32 %v195, 7
      %v197 = vadd.s32 %v196, 8
      %v198 = vadd.s32 %v196, 16
      %v199 = vadd.s32 %v196, 24
      %v200 = vadd.s32 %v196, 32
      %v201 = vadd.s32 %v196, 40
      %v202 = vadd.s32 %v196, 48
      %v203 = vadd.s32 %v196, 56
      %v204 = vstv %s194
      %v205 = vadd.s32 %v204, %v196
      %v206 = vadd.s32 %v204, %v197
      %v207 = vadd.s32 %v204, %v198
      %v208 = vadd.s32 %v204, %v199
      %v209 = vadd.s32 %v204, %v200
      %v210 = vadd.s32 %v204, %v201
      %v211 = vadd.s32 %v204, %v202
      %v212 = vadd.s32 %v204, %v203
      %vm213 = vcmp.lt.s32.totalorder %v205, 64
      %vm214 = vcmp.lt.s32.totalorder %v206, 64
      %vm215 = vcmp.lt.s32.totalorder %v207, 64
      %vm216 = vcmp.lt.s32.totalorder %v208, 64
      %vm217 = vcmp.lt.s32.totalorder %v209, 64
      %vm218 = vcmp.lt.s32.totalorder %v210, 64
      %vm219 = vcmp.lt.s32.totalorder %v211, 64
      %vm220 = vcmp.lt.s32.totalorder %v212, 64
      %vm221 = vmand %vm186, %vm213
      %vm222 = vmand %vm187, %vm214
      %vm223 = vmand %vm188, %vm215
      %vm224 = vmand %vm189, %vm216
      %vm225 = vmand %vm190, %vm217
      %vm226 = vmand %vm191, %vm218
      %vm227 = vmand %vm192, %vm219
      %vm228 = vmand %vm193, %vm220
      %v229 = vsub.f32 %v170, %v178
      %v230 = vsub.f32 %v171, %v179
      %v231 = vsub.f32 %v172, %v180
      %v232 = vsub.f32 %v173, %v181
      %v233 = vsub.f32 %v174, %v182
      %v234 = vsub.f32 %v175, %v183
      %v235 = vsub.f32 %v176, %v184
      %v236 = vsub.f32 %v177, %v185
      %v237 = vand.u32 2147483647, %v229
      %v238 = vand.u32 2147483647, %v230
      %v239 = vand.u32 2147483647, %v231
      %v240 = vand.u32 2147483647, %v232
      %v241 = vand.u32 2147483647, %v233
      %v242 = vand.u32 2147483647, %v234
      %v243 = vand.u32 2147483647, %v235
      %v244 = vand.u32 2147483647, %v236
      %v245 = vsel %vm221, %v237, 0.0
      %v246 = vsel %vm222, %v238, 0.0
      %v247 = vsel %vm223, %v239, 0.0
      %v248 = vsel %vm224, %v240, 0.0
      %v249 = vsel %vm225, %v241, 0.0
      %v250 = vsel %vm226, %v242, 0.0
      %v251 = vsel %vm227, %v243, 0.0
      %v252 = vsel %vm228, %v244, 0.0
      %v253 = vsel %vm221, 1.0, 0.0
      %v254 = vsel %vm222, 1.0, 0.0
      %v255 = vsel %vm223, 1.0, 0.0
      %v256 = vsel %vm224, 1.0, 0.0
      %v257 = vsel %vm225, 1.0, 0.0
      %v258 = vsel %vm226, 1.0, 0.0
      %v259 = vsel %vm227, 1.0, 0.0
      %v260 = vsel %vm228, 1.0, 0.0
      %v261 = vadd.f32 %v245, %v246
      %v262 = vadd.f32 %v261, %v247
      %v263 = vadd.f32 %v262, %v248
      %v264 = vadd.f32 %v263, %v249
      %v265 = vadd.f32 %v264, %v250
      %v266 = vadd.f32 %v265, %v251
      %v267 = vadd.f32 %v266, %v252
      %v268 = vadd.f32 %v267, 0.0
      %v269 = vadd.f32 %v253, %v254
      %v270 = vadd.f32 %v269, %v255
      %v271 = vadd.f32 %v270, %v256
      %v272 = vadd.f32 %v271, %v257
      %v273 = vadd.f32 %v272, %v258
      %v274 = vadd.f32 %v273, %v259
      %v275 = vadd.f32 %v274, %v260
      %v276 = vadd.f32 %v275, 0.0
      %v277 = vld [vmem:[#allocation7] sm:$0xff]
      %v278 = vadd.f32 %v277, %v268
      %279 = vst [vmem:[#allocation7] sm:$0xff] %v278
      %v280 = vld [vmem:[#allocation8] sm:$0xff]
      %v281 = vadd.f32 %v280, %v276
      %282 = vst [vmem:[#allocation8] sm:$0xff] %v281
    $region29: #{tpu_custom_call.1} parent=1 // pred_fallthru
      _
    // Predicated region
    $region30: #{tpu_custom_call.1} parent=1 // pred_check
      _
    $region31: #{tpu_custom_call.1} parent=1 // pred_check_branch
      %284 = sbr.rel (0) target = $region33
    $region32: #{tpu_custom_call.1} parent=1 // pred_region
      %286 = vsyncadd [#allocation4], 0
      %s288 = sshll.u32 [#allocation7], 4
      %s289 = int_to_ptr.vmem [resolvable:$true] %s288
      %s290 = sshll.u32 %s2, 4
      %s291 = int_to_ptr.hbm [resolvable:$true] %s290
      %293 = dma.vmem_to_hbm [thread:$0]  %s289, 128, %s291, [#allocation4]
    $region33: #{tpu_custom_call.1} parent=1 // pred_fallthru
      _
    // Predicated region
    $region34: #{tpu_custom_call.1} parent=1 // pred_check
      _
    $region35: #{tpu_custom_call.1} parent=1 // pred_check_branch
      %295 = sbr.rel (0) target = $region37
    $region36: #{tpu_custom_call.1} parent=1 // pred_region
      %297 = vsyncadd [#allocation9], 0
      %s299 = sshll.u32 [#allocation8], 4
      %s300 = int_to_ptr.vmem [resolvable:$true] %s299
      %s301 = sshll.u32 %s3, 4
      %s302 = int_to_ptr.hbm [resolvable:$true] %s301
      %304 = dma.vmem_to_hbm [thread:$0]  %s300, 128, %s302, [#allocation9]
    $region37: #{tpu_custom_call.1} parent=1 // pred_fallthru
      _
    // Predicated region
    $region38: #{tpu_custom_call.1} parent=1 // pred_check
      _
    $region39: #{tpu_custom_call.1} parent=1 // pred_check_branch
      %306 = sbr.rel (0) target = $region41
    $region40: #{tpu_custom_call.1} parent=1 // pred_region
      %308 = dma.done [#allocation4], 128
    $region41: #{tpu_custom_call.1} parent=1 // pred_fallthru
      _
    // Predicated region
    $region42: #{tpu_custom_call.1} parent=1 // pred_check
      _
    $region43: #{tpu_custom_call.1} parent=1 // pred_check_branch
      %310 = sbr.rel (0) target = $region45
    $region44: #{tpu_custom_call.1} parent=1 // pred_region
      %312 = dma.done [#allocation9], 128
    $region45: #{tpu_custom_call.1} parent=1 // pred_fallthru
      _
    %313 = vsyncpa [#allocation3], 1
    %314 = vsyncpa [#allocation6], 1
    %315 = vsyncpa [#allocation4], 1
    %316 = vsyncpa [#allocation9], 1

</llo_original>
